<compile_context>
chip_gen: v6e
topology: v6e:2x2x1
jax: 0.10.0
libtpu: 0.0.40
codegen_flags: <defaults>
</compile_context>

<pallas_src>
import functools
import math

import jax
import jax.numpy as jnp
from jax.experimental import pallas as pl
from jax.experimental.pallas import tpu as pltpu


def _round_up(x: int, m: int) -> int:
    return (x + m - 1) // m * m


def _eq_linear_kernel(x_ref, w_ref, b_ref, o_ref, acc_ref, *, scale):
    # x_ref:   (tm, tk)  activation rows x in_features slice
    # w_ref:   (tk, tn)  pre-transposed weight slice (in_features x out_features)
    # b_ref:   (1, tn)   f32 bias tile
    # o_ref:   (tm, tn)  output tile (tn is a multiple of 128 -> lane dense)
    # acc_ref: (tm, tn)  f32 accumulator, resident across the K grid axis
    k = pl.program_id(2)

    @pl.when(k == 0)
    def _():
        acc_ref[...] = jnp.zeros_like(acc_ref)

    # NN contraction -> no per-step weight-tile transpose on the MXU path.
    acc_ref[...] += jnp.dot(
        x_ref[...], w_ref[...], preferred_element_type=jnp.float32
    )

    @pl.when(k == pl.num_programs(2) - 1)
    def _():
        out = acc_ref[...] * scale + b_ref[...]
        o_ref[...] = out.astype(o_ref.dtype)


@functools.partial(
    jax.jit, static_argnames=("tm", "tn", "tk", "use_bf16_inputs")
)
def equalized_linear(x, w_hat, bias, *, tm=512, tn=512, tk=1024,
                     use_bf16_inputs=True):
    """EqualizedLinear forward.

    x:     (..., in_features)
    w_hat: (out_features, in_features)   stored (unscaled) weight
    bias:  (out_features,)
    """
    out_features, in_features = w_hat.shape
    scale = 1.0 / math.sqrt(in_features)  # EqualizedWeight constant c
    out_dtype = x.dtype

    lead_shape = x.shape[:-1]
    x2 = x.reshape(-1, in_features)
    M, K = x2.shape
    N = out_features

    # ---- tile selection --------------------------------------------------
    # M (sublane of x/out): full extent when small -> no activation padding.
    if M <= tm:
        tm, Mp = M, M
    else:
        Mp = _round_up(M, tm)
    # K (contraction): full extent when small.
    if K <= tk:
        tk, Kp = K, K
    else:
        Kp = _round_up(K, tk)
    # N (lane axis of the output): always a multiple of 128 so the output
    # store is unmasked; padding only touches the small weight/bias tensors.
    n128 = _round_up(N, 128)
    if n128 <= tn:
        tn, Np = n128, n128
    else:
        Np = _round_up(N, tn)

    # v7x has 2 TensorCores; make sure the parallel grid has >= 2 blocks.
    if (Mp // tm) * (Np // tn) < 2:
        if tm % 16 == 0:
            tm //= 2
        elif tn % 256 == 0:
            tn //= 2

    # ---- operand prep (one-time, wrapper side) ---------------------------
    compute_dtype = jnp.bfloat16 if use_bf16_inputs else x2.dtype
    x2 = x2.astype(compute_dtype)
    w2 = w_hat.T.astype(compute_dtype)               # (K, N), transposed once
    if (Mp, Kp) != (M, K):
        x2 = jnp.pad(x2, ((0, Mp - M), (0, Kp - K)))  # only if M/K are ragged
    if (Kp, Np) != (K, N):
        w2 = jnp.pad(w2, ((0, Kp - K), (0, Np - N)))
    b2 = bias.astype(jnp.float32).reshape(1, N)
    if Np != N:
        b2 = jnp.pad(b2, ((0, 0), (0, Np - N)))

    grid = (Mp // tm, Np // tn, Kp // tk)

    # ---- VMEM budget + cost hint -----------------------------------------
    in_isize = jnp.dtype(compute_dtype).itemsize
    out_isize = jnp.dtype(out_dtype).itemsize
    working_set = (
        2 * (tm * tk * in_isize + tk * tn * in_isize
             + tm * tn * out_isize + tn * 4)
        + tm * tn * 4
    )
    vmem_limit = min(max(int(working_set * 1.5), 16 * 1024 * 1024),
                     48 * 1024 * 1024)   # never above v7x's 64 MiB physical

    cost = pl.CostEstimate(
        flops=2 * Mp * Np * Kp,
        transcendentals=0,
        bytes_accessed=(Mp * Kp * in_isize * (Np // tn)
                        + Kp * Np * in_isize * (Mp // tm)
                        + Np * 4
                        + Mp * Np * out_isize),
    )

    out = pl.pallas_call(
        functools.partial(_eq_linear_kernel, scale=scale),
        out_shape=jax.ShapeDtypeStruct((Mp, Np), out_dtype),
        grid=grid,
        in_specs=[
            pl.BlockSpec((tm, tk), lambda i, j, k: (i, k)),   # x rows x K
            pl.BlockSpec((tk, tn), lambda i, j, k: (k, j)),   # weight K x N
            pl.BlockSpec((1, tn), lambda i, j, k: (0, j)),    # bias
        ],
        out_specs=pl.BlockSpec((tm, tn), lambda i, j, k: (i, j)),
        scratch_shapes=[pltpu.VMEM((tm, tn), jnp.float32)],
        compiler_params=pltpu.CompilerParams(
            dimension_semantics=("parallel", "parallel", "arbitrary"),
            vmem_limit_bytes=vmem_limit,
        ),
        cost_estimate=cost,
    )(x2, w2, b2)

    out = out[:M, :N]
    return out.reshape(*lead_shape, N)


def _reference(x, w_hat, bias):
    c = 1.0 / math.sqrt(w_hat.shape[1])
    return jnp.matmul(x, (w_hat * c).T) + bias


if __name__ == "__main__":
    key = jax.random.PRNGKey(0)
    k_x, k_w = jax.random.split(key)

    batch, seq, in_features, out_features = 2, 8, 32, 64
    bias_init = 0.1  # EqualizedLinear(bias=0.1): bias param = ones * 0.1

    x = jax.random.normal(k_x, (batch, seq, in_features), dtype=jnp.float32)
    # EqualizedWeight stores \hat{w} ~ N(0, 1); effective weight is c * \hat{w}
    w_hat = jax.random.normal(k_w, (out_features, in_features), dtype=jnp.float32)
    bias = jnp.full((out_features,), bias_init, dtype=jnp.float32)

    y = equalized_linear(x, w_hat, bias)
    y = jax.block_until_ready(y)

    y_ref = _reference(x, w_hat, bias)
    assert y.shape == (batch, seq, out_features)
    # Tolerance covers the bf16 MXU operands (f32 accumulate); pass
    # use_bf16_inputs=False for strict-f32 behaviour.
    assert jnp.allclose(y, y_ref, atol=2e-2, rtol=2e-2), float(
        jnp.max(jnp.abs(y - y_ref))
    )

    print("KERNEL_OK")
</pallas_src>

<mosaic_0001>
module attributes {stable_mosaic.version = 11 : i64} {
  func.func @_eq_linear_kernel(%arg0: i32, %arg1: i32, %arg2: i32, %arg3: memref<8x32xbf16, #tpu.memory_space<vmem>>, %arg4: memref<32x128xbf16, #tpu.memory_space<vmem>>, %arg5: memref<1x128xf32, #tpu.memory_space<vmem>>, %arg6: memref<8x128xf32, #tpu.memory_space<vmem>>, %arg7: memref<8x128xf32, #tpu.memory_space<vmem>>) attributes {dimension_semantics = [#tpu.dimension_semantics<parallel>, #tpu.dimension_semantics<parallel>, #tpu.dimension_semantics<arbitrary>], iteration_bounds = array<i64: 2, 1, 1>, scalar_prefetch = 0 : i64, scratch_operands = 1 : i64, tpu.core_type = #tpu.core_type<tc>, window_params = [{transform_indices = @transform_0, window_bounds = array<i64: 8, 32>}, {transform_indices = @transform_1, window_bounds = array<i64: 32, 128>}, {transform_indices = @transform_2, window_bounds = array<i64: 1, 128>}, {transform_indices = @transform_3, window_bounds = array<i64: 8, 128>}]} {
    %c0_i32 = arith.constant 0 : i32
    %0 = arith.cmpi eq, %arg2, %c0_i32 : i32
    %1 = arith.extui %0 : i1 to i32
    %c0_i32_0 = arith.constant 0 : i32
    %2 = arith.cmpi ne, %1, %c0_i32_0 : i32
    scf.if %2 {
      %cst_10 = arith.constant 0.000000e+00 : f32
      %12 = vector.broadcast %cst_10 : f32 to vector<8x128xf32>
      %c0_11 = arith.constant 0 : index
      %c0_12 = arith.constant 0 : index
      %13 = vector.load %arg7[%c0_11, %c0_12] : memref<8x128xf32, #tpu.memory_space<vmem>>, vector<8x128xf32>
      tpu.vector_store %arg7[%c0_11, %c0_12], %12 {strides = array<i32>} : memref<8x128xf32, #tpu.memory_space<vmem>>, vector<8x128xf32>,
    } else {
    }
    %c0 = arith.constant 0 : index
    %c0_1 = arith.constant 0 : index
    %3 = vector.load %arg7[%c0, %c0_1] : memref<8x128xf32, #tpu.memory_space<vmem>>, vector<8x128xf32>
    %c0_2 = arith.constant 0 : index
    %c0_3 = arith.constant 0 : index
    %4 = vector.load %arg3[%c0_2, %c0_3] : memref<8x32xbf16, #tpu.memory_space<vmem>>, vector<8x32xbf16>
    %c0_4 = arith.constant 0 : index
    %c0_5 = arith.constant 0 : index
    %5 = vector.load %arg4[%c0_4, %c0_5] : memref<32x128xbf16, #tpu.memory_space<vmem>>, vector<32x128xbf16>
    %cst = arith.constant dense<0.000000e+00> : vector<8x128xf32>
    %6 = tpu.matmul %4, %5, %cst {dimension_numbers = #tpu.dot_dimension_numbers<[1], [0], [0], [1], [0, 0, 1, 1], [], []>} : vector<8x32xbf16>, vector<32x128xbf16>, vector<8x128xf32> -> vector<8x128xf32>
    %7 = arith.addf %3, %6 : vector<8x128xf32>
    %c0_6 = arith.constant 0 : index
    %c0_7 = arith.constant 0 : index
    %8 = vector.load %arg7[%c0_6, %c0_7] : memref<8x128xf32, #tpu.memory_space<vmem>>, vector<8x128xf32>
    tpu.vector_store %arg7[%c0_6, %c0_7], %7 {strides = array<i32>} : memref<8x128xf32, #tpu.memory_space<vmem>>, vector<8x128xf32>,
    %c0_i32_8 = arith.constant 0 : i32
    %9 = arith.cmpi eq, %arg2, %c0_i32_8 : i32
    %10 = arith.extui %9 : i1 to i32
    %c0_i32_9 = arith.constant 0 : i32
    %11 = arith.cmpi ne, %10, %c0_i32_9 : i32
    scf.if %11 {
      %c0_10 = arith.constant 0 : index
      %c0_11 = arith.constant 0 : index
      %12 = vector.load %arg7[%c0_10, %c0_11] : memref<8x128xf32, #tpu.memory_space<vmem>>, vector<8x128xf32>
      %cst_12 = arith.constant 0.176776692 : f32
      %13 = vector.broadcast %cst_12 : f32 to vector<8x128xf32>
      %14 = arith.mulf %12, %13 : vector<8x128xf32>
      %c0_13 = arith.constant 0 : index
      %c0_14 = arith.constant 0 : index
      %15 = vector.load %arg5[%c0_13, %c0_14] : memref<1x128xf32, #tpu.memory_space<vmem>>, vector<1x128xf32>
      %16 = vector.broadcast %15 : vector<1x128xf32> to vector<8x128xf32>
      %17 = arith.addf %14, %16 : vector<8x128xf32>
      %c0_15 = arith.constant 0 : index
      %c0_16 = arith.constant 0 : index
      %18 = vector.load %arg6[%c0_15, %c0_16] : memref<8x128xf32, #tpu.memory_space<vmem>>, vector<8x128xf32>
      tpu.vector_store %arg6[%c0_15, %c0_16], %17 {strides = array<i32>} : memref<8x128xf32, #tpu.memory_space<vmem>>, vector<8x128xf32>,
    } else {
    }
    return
  }
  func.func @transform_0(%arg0: i32, %arg1: i32, %arg2: i32) -> (i32, i32) {
    %c0_i32 = arith.constant 0 : i32
    return %arg0, %arg2 : i32, i32
  }
  func.func @transform_1(%arg0: i32, %arg1: i32, %arg2: i32) -> (i32, i32) {
    %c0_i32 = arith.constant 0 : i32
    return %arg2, %arg1 : i32, i32
  }
  func.func @transform_2(%arg0: i32, %arg1: i32, %arg2: i32) -> (i32, i32) {
    %c0_i32 = arith.constant 0 : i32
    %c0_i32_0 = arith.constant 0 : i32
    return %c0_i32, %arg1 : i32, i32
  }
  func.func @transform_3(%arg0: i32, %arg1: i32, %arg2: i32) -> (i32, i32) {
    %c0_i32 = arith.constant 0 : i32
    return %arg0, %arg1 : i32, i32
  }
}

</mosaic_0001>

<llo_original>
// kernel: equalized_linear.1
$region0: #{equalized_linear.1}
  #allocation0 [shape = 'u32[]', space=smem, size = 0x4, offset = 0x4, fixed_abs, tag = 'smem constant byte address 0x4 - core index']
  #allocation1 [shape = 'u32[144,128]{1,0:T(1,128)}', space=vmem, size = 0x12000, scoped, tag = 'internal scratch']
  #allocation2 [shape = 'f32[8,128]{1,0:T(8,128)}', space=vmem, size = 0x1000, scoped, tag = 'scratch operand']
  %s0 = inlined_call_operand.vmem [shape: bf16[16,32], index: 0, kind: input, shape index: {}]
  %s1 = inlined_call_operand.vmem [shape: bf16[32,128], index: 1, kind: input, shape index: {}]
  %s2 = inlined_call_operand.vmem [shape: f32[1,128], index: 2, kind: input, shape index: {}]
  %s3 = inlined_call_operand.vmem [shape: f32[16,128], index: 3, kind: output, shape index: {}]
  %s4 = sld [smem:[#allocation0]]
  $region53: #{equalized_linear.1} parent=0
    _
  %s6 = ssub.s32 1, %s4
  %s7 = scalar_select 0, %s6, %s4
  loop: start=0, step=1, limit=4
  $region2: #{equalized_linear.1} parent=0 // loop_pre_header
    _
  $region3: #{equalized_linear.1} parent=0 // loop_header
    %s9 = sphi 0, %s13
    %p10 = scmp.ge.s32.totalorder %s9, 4
    %s16 = sphi 0, %s35
    %s17 = sphi 0, %s31
    %s18 = sphi 0, %s27
    %s19 = sphi 0, %s16
    %s20 = sphi 0, %s17
    %s21 = sphi 0, %s18
    %s22 = sphi 0, %s19
    %s23 = sphi 0, %s20
    %s24 = sphi 0, %s21
    %s40 = sphi 0, %s42
    %s43 = sphi 0, %s40
    %s44 = sphi 0, %s43
    %s60 = sphi 0, %s44
    %s68 = sphi 0, %s70
    %s71 = sphi 0, %s68
    %s72 = sphi 0, %s71
    %s88 = sphi 0, %s72
    %s94 = sphi 0, %s96
    %s97 = sphi 0, %s94
    %s98 = sphi 0, %s97
    %s114 = sphi 0, %s98
    %s122 = sphi 0, %s124
    %s125 = sphi 0, %s122
    %s126 = sphi 0, %s125
    %s142 = sphi 0, %s126
  $region4: #{equalized_linear.1} parent=0 // loop_header_branch
    %12 = sbr.rel (%p10) target = $region8
  $region5: #{equalized_linear.1} parent=0 // loop_body
    %s14 = ssub.s32 %s9, 1
    %s15 = ssub.s32 %s9, 2
    %s25 = sadd.s32 1, %s18
    %p26 = scmp.ge.s32.totalorder %s25, 1
    %s27 = scalar_select %p26, 0, %s25
    %s28 = sadd.s32 1, %s17
    %s29 = scalar_select %p26, %s28, %s17
    %p30 = scmp.ge.s32.totalorder %s29, 1
    %s31 = scalar_select %p30, 0, %s29
    %s32 = sadd.s32 1, %s16
    %s33 = scalar_select %p30, %s32, %s16
    %p34 = scmp.ge.s32.totalorder %s33, 2
    %s35 = scalar_select %p34, 0, %s33
    %s36 = ssub.s32 %s16, %s35
    %s37 = ssub.s32 %s18, %s27
    %s38 = sor.u32 %s36, %s37
    %p39 = scmp.eq.s32.totalorder %s38, 0
    %s41 = sadd.s32 %s40, 1
    %s42 = scalar_select %p39, %s40, %s41
    %p45 = pneg %p39
    %p46 = scmp.eq.s32.totalorder %s9, 1
    %p47 = por %p45, %p46
    %p48 = scmp.ne.s32.totalorder %s40, %s43
    %p49 = scmp.eq.s32.totalorder %s9, 0
    %p50 = por %p48, %p49
    %p51 = scmp.ne.s32.totalorder %s40, %s43
    %p52 = scmp.eq.s32.totalorder %s14, 1
    %p53 = por %p51, %p52
    %p54 = scmp.ne.s32.totalorder %s43, %s44
    %p55 = scmp.eq.s32.totalorder %s14, 0
    %p56 = por %p54, %p55
    %p57 = scmp.ne.s32.totalorder %s43, %s44
    %p58 = scmp.eq.s32.totalorder %s15, 1
    %p59 = por %p57, %p58
    %p61 = scmp.ne.s32.totalorder %s44, %s60
    %p62 = scmp.eq.s32.totalorder %s15, 0
    %p63 = por %p61, %p62
    %s64 = ssub.s32 %s18, %s27
    %s65 = ssub.s32 %s17, %s31
    %s66 = sor.u32 %s64, %s65
    %p67 = scmp.eq.s32.totalorder %s66, 0
    %s69 = sadd.s32 %s68, 1
    %s70 = scalar_select %p67, %s68, %s69
    %p73 = pneg %p67
    %p74 = scmp.eq.s32.totalorder %s9, 1
    %p75 = por %p73, %p74
    %p76 = scmp.ne.s32.totalorder %s68, %s71
    %p77 = scmp.eq.s32.totalorder %s9, 0
    %p78 = por %p76, %p77
    %p79 = scmp.ne.s32.totalorder %s68, %s71
    %p80 = scmp.eq.s32.totalorder %s14, 1
    %p81 = por %p79, %p80
    %p82 = scmp.ne.s32.totalorder %s71, %s72
    %p83 = scmp.eq.s32.totalorder %s14, 0
    %p84 = por %p82, %p83
    %p85 = scmp.ne.s32.totalorder %s71, %s72
    %p86 = scmp.eq.s32.totalorder %s15, 1
    %p87 = por %p85, %p86
    %p89 = scmp.ne.s32.totalorder %s72, %s88
    %p90 = scmp.eq.s32.totalorder %s15, 0
    %p91 = por %p89, %p90
    %s92 = ssub.s32 %s17, %s31
    %p93 = scmp.eq.s32.totalorder %s92, 0
    %s95 = sadd.s32 %s94, 1
    %s96 = scalar_select %p93, %s94, %s95
    %p99 = pneg %p93
    %p100 = scmp.eq.s32.totalorder %s9, 1
    %p101 = por %p99, %p100
    %p102 = scmp.ne.s32.totalorder %s94, %s97
    %p103 = scmp.eq.s32.totalorder %s9, 0
    %p104 = por %p102, %p103
    %p105 = scmp.ne.s32.totalorder %s94, %s97
    %p106 = scmp.eq.s32.totalorder %s14, 1
    %p107 = por %p105, %p106
    %p108 = scmp.ne.s32.totalorder %s97, %s98
    %p109 = scmp.eq.s32.totalorder %s14, 0
    %p110 = por %p108, %p109
    %p111 = scmp.ne.s32.totalorder %s97, %s98
    %p112 = scmp.eq.s32.totalorder %s15, 1
    %p113 = por %p111, %p112
    %p115 = scmp.ne.s32.totalorder %s98, %s114
    %p116 = scmp.eq.s32.totalorder %s15, 0
    %p117 = por %p115, %p116
    %s118 = ssub.s32 %s16, %s35
    %s119 = ssub.s32 %s17, %s31
    %s120 = sor.u32 %s118, %s119
    %p121 = scmp.eq.s32.totalorder %s120, 0
    %s123 = sadd.s32 %s122, 1
    %s124 = scalar_select %p121, %s122, %s123
    %p127 = pneg %p121
    %p128 = scmp.eq.s32.totalorder %s9, 1
    %p129 = por %p127, %p128
    %p130 = scmp.ne.s32.totalorder %s122, %s125
    %p131 = scmp.eq.s32.totalorder %s9, 0
    %p132 = por %p130, %p131
    %p133 = scmp.ne.s32.totalorder %s122, %s125
    %p134 = scmp.eq.s32.totalorder %s14, 1
    %p135 = por %p133, %p134
    %p136 = scmp.ne.s32.totalorder %s125, %s126
    %p137 = scmp.eq.s32.totalorder %s14, 0
    %p138 = por %p136, %p137
    %p139 = scmp.ne.s32.totalorder %s125, %s126
    %p140 = scmp.eq.s32.totalorder %s15, 1
    %p141 = por %p139, %p140
    %p143 = scmp.ne.s32.totalorder %s126, %s142
    %p144 = scmp.eq.s32.totalorder %s15, 0
    %p145 = por %p143, %p144
    %p146 = scmp.le.s32.totalorder 1, %s9
    %p147 = scmp.lt.s32.totalorder %s9, 3
    %p148 = pnand %p146, %p147
    %p149 = pneg %p148
    // Predicated region
    $region9: #{equalized_linear.1} parent=5 // pred_check
      _
    $region10: #{equalized_linear.1} parent=5 // pred_check_branch
      %151 = sbr.rel (%p148) target = $region12
    $region11: #{equalized_linear.1} parent=5 // pred_region
      %s152 = ssub.s32 %s9, 1
      // Predicated region
      $region13: #{equalized_linear.1} parent=11 // pred_check
        %p153 = pneg %p84
      $region14: #{equalized_linear.1} parent=11 // pred_check_branch
        %155 = sbr.rel (%p153) target = $region16
      $region15: #{equalized_linear.1} parent=11 // pred_region
        %s156 = smul.u32 4, %s21
        %p157 = scmp.lt.s32.totalorder %s156, 3
        %s158 = scalar_select %p157, %s156, 3
        %p159 = scmp.lt.s32.totalorder %s20, 0
        %s160 = scalar_select %p159, %s20, 0
        %s161 = sadd.s32 %s160, %s158
        %s162 = smul.addr %s161, 4
        %s163 = scalar_lea.vmem %s1, %s162
        %s164 = smul.u32 4, %s21
      $region16: #{equalized_linear.1} parent=11 // pred_fallthru
        _
      // Predicated region
      $region17: #{equalized_linear.1} parent=11 // pred_check
        %p165 = pneg %p110
      $region18: #{equalized_linear.1} parent=11 // pred_check_branch
        %167 = sbr.rel (%p165) target = $region20
      $region19: #{equalized_linear.1} parent=11 // pred_region
        %p168 = scmp.lt.s32.totalorder %s20, 0
        %s169 = scalar_select %p168, %s20, 0
        %s170 = scalar_lea.vmem %s2, %s169
      $region20: #{equalized_linear.1} parent=11 // pred_fallthru
        _
    $region12: #{equalized_linear.1} parent=5 // pred_fallthru
      _
    %p171 = scmp.lt.s32.totalorder %s9, 2
    // Predicated region
    $region21: #{equalized_linear.1} parent=5 // pred_check
      %p172 = pneg %p171
    $region22: #{equalized_linear.1} parent=5 // pred_check_branch
      %174 = sbr.rel (%p172) target = $region24
    $region23: #{equalized_linear.1} parent=5 // pred_region
      // Predicated region
      $region25: #{equalized_linear.1} parent=23 // pred_check
        %p175 = pneg %p50
      $region26: #{equalized_linear.1} parent=23 // pred_check_branch
        %177 = sbr.rel (%p175) target = $region28
      $region27: #{equalized_linear.1} parent=23 // pred_region
        %p178 = scmp.lt.s32.totalorder %s16, 1
        %s179 = scalar_select %p178, %s16, 1
        %p180 = scmp.lt.s32.totalorder %s18, 0
        %s181 = scalar_select %p180, %s18, 0
        %s182 = sadd.s32 %s181, %s179
        %s183 = smul.addr %s182, 4
        %s184 = scalar_lea.vmem %s0, %s183
      $region28: #{equalized_linear.1} parent=23 // pred_fallthru
        _
    $region24: #{equalized_linear.1} parent=5 // pred_fallthru
      _
    %p185 = scmp.le.s32.totalorder 1, %s9
    %p186 = scmp.lt.s32.totalorder %s9, 3
    %p187 = pnand %p185, %p186
    %p188 = pneg %p187
    // Predicated region
    $region29: #{equalized_linear.1} parent=5 // pred_check
      _
    $region30: #{equalized_linear.1} parent=5 // pred_check_branch
      %190 = sbr.rel (%p187) target = $region32
    $region31: #{equalized_linear.1} parent=5 // pred_region
      %s191 = ssub.s32 %s9, 1
      %p192 = scmp.lt.s32.totalorder %s19, 1
      %s193 = scalar_select %p192, %s19, 1
      %p194 = scmp.lt.s32.totalorder %s21, 0
      %s195 = scalar_select %p194, %s21, 0
      %s196 = sadd.s32 %s195, %s193
      %s197 = smul.addr %s196, 4
      %s198 = scalar_lea.vmem %s0, %s197
      %p199 = pneg %p56
      %p200 = pneg %p53
      %s201 = smul.u32 4, %s21
      %p202 = scmp.lt.s32.totalorder %s201, 3
      %s203 = scalar_select %p202, %s201, 3
      %p204 = scmp.lt.s32.totalorder %s20, 0
      %s205 = scalar_select %p204, %s20, 0
      %s206 = sadd.s32 %s205, %s203
      %s207 = smul.addr %s206, 4
      %s208 = scalar_lea.vmem %s1, %s207
      %p209 = pneg %p84
      %p210 = pneg %p81
      %p211 = scmp.lt.s32.totalorder %s20, 0
      %s212 = scalar_select %p211, %s20, 0
      %s213 = scalar_lea.vmem %s2, %s212
      %p214 = pneg %p110
      %p215 = pneg %p107
      %p216 = pneg %p138
      %p217 = pneg %p135
      %p218 = scmp.lt.s32.totalorder %s19, 1
      %s219 = scalar_select %p218, %s19, 1
      %p220 = scmp.lt.s32.totalorder %s20, 0
      %s221 = scalar_select %p220, %s20, 0
      %s222 = sadd.s32 %s221, %s219
      %s223 = smul.addr %s222, 8
      %s224 = scalar_lea.vmem %s3, %s223
      %p225 = scmp.lt.s32.totalorder %s19, 1
      %s226 = scalar_select %p225, %s19, 1
      %p227 = scmp.lt.s32.totalorder %s21, 0
      %s228 = scalar_select %p227, %s21, 0
      %s229 = sadd.s32 %s228, %s226
      %s230 = smul.addr %s229, 4
      %s231 = scalar_lea.vmem %s0, %s230
      %s232 = smul.u32 4, %s21
      %p233 = scmp.lt.s32.totalorder %s232, 3
      %s234 = scalar_select %p233, %s232, 3
      %p235 = scmp.lt.s32.totalorder %s20, 0
      %s236 = scalar_select %p235, %s20, 0
      %s237 = sadd.s32 %s236, %s234
      %s238 = smul.addr %s237, 4
      %s239 = scalar_lea.vmem %s1, %s238
      %s240 = smul.u32 4, %s21
      %p241 = scmp.lt.s32.totalorder %s20, 0
      %s242 = scalar_select %p241, %s20, 0
      %s243 = scalar_lea.vmem %s2, %s242
      %p244 = scmp.lt.s32.totalorder %s19, 1
      %s245 = scalar_select %p244, %s19, 1
      %p246 = scmp.lt.s32.totalorder %s20, 0
      %s247 = scalar_select %p246, %s20, 0
      %s248 = sadd.s32 %s247, %s245
      %s249 = smul.addr %s248, 8
      %s250 = scalar_lea.vmem %s3, %s249
      %p252 = scmp.eq.s32.totalorder %s21, 0
      // Predicated region
      $region33: #{equalized_linear.1} parent=31 // pred_check
        %p253 = pneg %p252
      $region34: #{equalized_linear.1} parent=31 // pred_check_branch
        %255 = sbr.rel (%p253) target = $region36
      $region35: #{equalized_linear.1} parent=31 // pred_region
        %256 = vst [vmem:[#allocation2] sm:$0xff] 0.0
      $region36: #{equalized_linear.1} parent=31 // pred_fallthru
        _
      %v257 = vld [vmem:[#allocation2] sm:$0xff]
      %v258 = vld [vmem:[%s231] sm:$0xf]
      %v259 = vld [vmem:[%s239] sm:$0xf]
      %v260 = vld [vmem:[%s239 + $0x4] sm:$0xf]
      %v261 = vld [vmem:[%s239 + $0x8] sm:$0xf]
      %v262 = vld [vmem:[%s239 + $0xc] sm:$0xf]
      %v267 = vunpack.c.l.b16 %v259
      %v268 = vunpack.c.l.b16 %v260
      %v269 = vunpack.c.l.b16 %v261
      %v270 = vunpack.c.l.b16 %v262
      %v271 = vpack.c.b16 %v268, %v267
      %v272 = vpack.c.b16 %v270, %v269
      %vm275 = vcmask 261120
      %v277 = vsel %vm275, %v258, 0
      %279 = vmatprep.subr.bf16.mxu0 0
      %280 = vmatpush1.bf16.msra.mxu0 0
      %281 = vmatprep.subr.bf16.mxu0 0
      %282 = vmatpush1.bf16.msra.mxu0 0
      %283 = vmatprep.subr.bf16.mxu0 0
      %284 = vmatpush1.bf16.msra.mxu0 0
      %285 = vmatprep.subr.bf16.mxu0 0
      %286 = vmatpush1.bf16.msra.mxu0 0
      %287 = vmatprep.subr.bf16.mxu0 0
      %288 = vmatpush1.bf16.msra.mxu0 0
      %289 = vmatprep.subr.bf16.mxu0 0
      %290 = vmatpush1.bf16.msra.mxu0 0
      %291 = vmatprep.subr.bf16.mxu0 0
      %292 = vmatpush1.bf16.msra.mxu0 %v272
      %293 = vmatprep.subr.bf16.mxu0 0
      %294 = vmatpush1.bf16.msra.mxu0 %v271
      %295 = vmatprep.subr.bf16.mxu0 0
      %296 = vmatpush2.bf16.msra.mxu0 0
      %297 = vmatprep.subr.bf16.mxu0 0
      %298 = vmatpush2.bf16.msra.mxu0 0
      %299 = vmatprep.subr.bf16.mxu0 0
      %300 = vmatpush2.bf16.msra.mxu0 0
      %301 = vmatprep.subr.bf16.mxu0 0
      %302 = vmatpush2.bf16.msra.mxu0 0
      %303 = vmatprep.subr.bf16.mxu0 0
      %304 = vmatpush2.bf16.msra.mxu0 0
      %305 = vmatprep.subr.bf16.mxu0 0
      %306 = vmatpush2.bf16.msra.mxu0 0
      %307 = vmatprep.subr.bf16.mxu0 0
      %308 = vmatpush2.bf16.msra.mxu0 0
      %309 = vmatprep.subr.bf16.mxu0 0
      %310 = vmatpush2.bf16.msra.mxu0 0
      %311 = vmatprep.mubr.bf16.mxu0 0
      %312 = vmatmul.mubr.bf16.gmra.mxu0 %v277
      %v313 = vpop.f32.mrf.mxu0
      %v314 = vadd.f32 0.0, %v313
      %v315 = vpop.f32.mrf.mxu0
      %v316 = vpop.f32.mrf.mxu0
      %v317 = vpop.f32.mrf.mxu0
      %318 = vdwg.mxu0
      %v319 = vadd.f32 %v257, %v314
      %320 = vst [vmem:[#allocation2] sm:$0xff] %v319
      // Predicated region
      $region37: #{equalized_linear.1} parent=31 // pred_check
        %p321 = pneg %p252
      $region38: #{equalized_linear.1} parent=31 // pred_check_branch
        %323 = sbr.rel (%p321) target = $region40
      $region39: #{equalized_linear.1} parent=31 // pred_region
        %v324 = vld [vmem:[#allocation2] sm:$0xff]
        %v325 = vmul.f32 %v324, 0.17677669
        %v326 = vld [vmem:[%s243] sm:$0x1]
        %v328 = vlaneseq
        %v329 = vshrl.u32 %v328, 7
        %v330 = vsub.s32 0, %v329
        %v331 = vrot.slane %v326, %v330
        %v333 = vadd.f32 %v325, %v331
        %334 = vst [vmem:[%s250] sm:$0xff] %v333
      $region40: #{equalized_linear.1} parent=31 // pred_fallthru
        _
      %p335 = scmp.lt.s32.totalorder %s19, 1
      %s336 = scalar_select %p335, %s19, 1
      %p337 = scmp.lt.s32.totalorder %s20, 0
      %s338 = scalar_select %p337, %s20, 0
      %s339 = sadd.s32 %s338, %s336
      %s340 = smul.addr %s339, 8
      %s341 = scalar_lea.vmem %s3, %s340
      // Predicated region
      $region41: #{equalized_linear.1} parent=31 // pred_check
        %p342 = pneg %p135
      $region42: #{equalized_linear.1} parent=31 // pred_check_branch
        %344 = sbr.rel (%p342) target = $region44
      $region43: #{equalized_linear.1} parent=31 // pred_region
        _
      $region44: #{equalized_linear.1} parent=31 // pred_fallthru
        _
    $region32: #{equalized_linear.1} parent=5 // pred_fallthru
      _
    %p345 = scmp.le.s32.totalorder 2, %s9
    // Predicated region
    $region45: #{equalized_linear.1} parent=5 // pred_check
      %p346 = pneg %p345
    $region46: #{equalized_linear.1} parent=5 // pred_check_branch
      %348 = sbr.rel (%p346) target = $region48
    $region47: #{equalized_linear.1} parent=5 // pred_region
      %s349 = ssub.s32 %s9, 2
      // Predicated region
      $region49: #{equalized_linear.1} parent=47 // pred_check
        %p350 = pneg %p141
      $region50: #{equalized_linear.1} parent=47 // pred_check_branch
        %352 = sbr.rel (%p350) target = $region52
      $region51: #{equalized_linear.1} parent=47 // pred_region
        %p353 = scmp.lt.s32.totalorder %s22, 1
        %s354 = scalar_select %p353, %s22, 1
        %p355 = scmp.lt.s32.totalorder %s23, 0
        %s356 = scalar_select %p355, %s23, 0
        %s357 = sadd.s32 %s356, %s354
        %s358 = smul.addr %s357, 8
        %s359 = scalar_lea.vmem %s3, %s358
      $region52: #{equalized_linear.1} parent=47 // pred_fallthru
        _
    $region48: #{equalized_linear.1} parent=5 // pred_fallthru
      _
  $region6: #{equalized_linear.1} parent=0 // loop_footer
    %s13 = sadd.s32 1, %s9
  $region7: #{equalized_linear.1} parent=0 // loop_footer_branch
    %8 = sbr.rel target = $region3
  $region8: #{equalized_linear.1} parent=0 // loop_exit
    _

</llo_original>
